<compile_context>
chip_gen: v7x
topology: tpu7x:2x2x1
jax: 0.10.0
libtpu: 0.0.40
codegen_flags: <defaults>
</compile_context>

<pallas_src>
import jax
import jax.numpy as jnp
from jax.experimental import pallas as pl
from jax.experimental.pallas import tpu as pltpu

PROMPT_LEN = 10  # fair_sent_dist has 10 rows in the reference module


def _cdiv(a, b):
    return -(-a // b)


def _gather_rows_kernel(ids_ref, table_ref, out_ref):
    """Exact embedding row gather.

    ids_ref   : (B_pad * T_pad,) int32 in SMEM (scalar prefetch) -- row ids to gather
    table_ref : (V, D) embedding table, VMEM resident (grid-invariant block)
    out_ref   : (ROWS, D) output block for this grid step, ROWS = BB * T_pad (mult. of 8)
    """
    blk = pl.program_id(0)
    rows_per_step, D = out_ref.shape
    n_groups = rows_per_step // 8
    id_base = blk * rows_per_step

    # Hoisted out of the loop (JAX does not CSE broadcast/iota inside loops).
    sub_iota = jax.lax.broadcasted_iota(jnp.int32, (8, D), 0)

    def body(g, carry):
        start = pl.multiple_of(g * 8, 8)
        # Assemble 8 gathered rows into one (8, D) vreg block (VPU selects fill an
        # otherwise-free slot), then issue a single dense 8-sublane store.
        tok0 = ids_ref[id_base + start]
        block = jnp.broadcast_to(table_ref[pl.ds(tok0, 1), :], (8, D))
        for r in range(1, 8):
            tok = ids_ref[id_base + start + r]
            rowb = jnp.broadcast_to(table_ref[pl.ds(tok, 1), :], (8, D))
            block = jnp.where(sub_iota == r, rowb, block)
        out_ref[pl.ds(start, 8), :] = block.astype(out_ref.dtype)
        return carry

    jax.lax.fori_loop(0, n_groups, body, 0, unroll=(n_groups <= 8))


def categorical_emb_forward(emb_weight, fair_sent_dist, input_ids, attn_mask, key):
    """Forward pass of CategoricalEmb. `key` supplies fresh Gumbel noise per call."""
    B, S = input_ids.shape
    V, D = emb_weight.shape
    T = PROMPT_LEN + S
    T_pad = _cdiv(T, 8) * 8
    itemsize = jnp.dtype(emb_weight.dtype).itemsize

    # --- Gumbel-softmax prompt selection (tau=1), hoisted out of the kernel ---------
    # argmax(softmax((logits + g)/tau)) == argmax(logits + g); the softmax cannot
    # change the argmax.  This is a tiny (10, V) op, computed once per call.
    g = jax.random.gumbel(key, fair_sent_dist.shape, dtype=jnp.float32)
    prompt_ids = jnp.argmax(
        fair_sent_dist.astype(jnp.float32) + g, axis=1).astype(jnp.int32)      # (10,)

    # --- Build the flat gather-id list: [prompt_ids | token_ids | pad] per batch row -
    ids_tok = jnp.clip(input_ids.astype(jnp.int32), 0, V - 1)   # bounds-safe gather
    full_ids = jnp.concatenate(
        [jnp.broadcast_to(prompt_ids[None, :], (B, PROMPT_LEN)), ids_tok], axis=1)
    full_ids = jnp.pad(full_ids, ((0, 0), (0, T_pad - T)))       # (B, T_pad), pad id 0

    # --- Grid blocking: a few meaty steps, not one micro-step per batch row ---------
    # Aim for 2 grid steps (v7x: one per TensorCore), capped so the (BB*T_pad, D)
    # output block (x2 pipeline buffers) stays within a modest VMEM budget.
    out_budget_bytes = 8 * 1024 * 1024
    max_bb = max(1, out_budget_bytes // max(1, T_pad * D * itemsize))
    BB = min(_cdiv(B, 2) if B > 1 else 1, max_bb)
    BB = max(BB, 1)
    num_blocks = _cdiv(B, BB)
    B_pad = num_blocks * BB

    full_ids = jnp.pad(full_ids, ((0, B_pad - B), (0, 0))).reshape(-1)   # 1-D SMEM ids

    # --- VMEM budget: raise the scoped limit when the vocab grows -------------------
    table_bytes = V * D * itemsize
    out_block_bytes = BB * T_pad * D * itemsize
    vmem_limit = int(min(100 * 1024 * 1024,
                         max(32 * 1024 * 1024,
                             2 * table_bytes + 2 * out_block_bytes + (4 << 20))))

    out_flat = pl.pallas_call(
        _gather_rows_kernel,
        out_shape=jax.ShapeDtypeStruct((B_pad * T_pad, D), emb_weight.dtype),
        grid_spec=pltpu.PrefetchScalarGridSpec(
            num_scalar_prefetch=1,                 # flat ids -> SMEM
            grid=(num_blocks,),
            in_specs=[
                # Whole table, grid-invariant index_map: DMA'd into VMEM exactly once.
                pl.BlockSpec((V, D), lambda i, ids: (0, 0)),
            ],
            out_specs=pl.BlockSpec((BB * T_pad, D), lambda i, ids: (i, 0)),
        ),
        compiler_params=pltpu.CompilerParams(
            dimension_semantics=("parallel",),     # batch blocks independent
            vmem_limit_bytes=vmem_limit,
        ),
    )(full_ids, emb_weight)

    embeddings = out_flat.reshape(B_pad, T_pad, D)[:B, :T, :]
    attention_mask = jnp.concatenate(
        [jnp.ones((B, PROMPT_LEN), dtype=attn_mask.dtype), attn_mask], axis=1)
    return embeddings, attention_mask


if __name__ == "__main__":
    key = jax.random.PRNGKey(0)
    k_emb, k_dist, k_ids, k_gumbel = jax.random.split(key, 4)

    V, D = 256, 128     # vocab size, embedding dim
    B, S = 2, 8         # batch, sequence length

    # deterministic parameter init (synthetic; no checkpoint load)
    emb_weight = jax.random.normal(k_emb, (V, D), dtype=jnp.float32)        # nn.Embedding weight
    fair_sent_dist = jax.random.normal(k_dist, (PROMPT_LEN, V), dtype=jnp.float32)

    input_ids = jax.random.randint(k_ids, (B, S), 0, V, dtype=jnp.int32)
    attn_mask = jnp.ones((B, S), dtype=jnp.int32)

    embeddings, attention_mask = categorical_emb_forward(
        emb_weight, fair_sent_dist, input_ids, attn_mask, k_gumbel)
    jax.block_until_ready((embeddings, attention_mask))

    assert embeddings.shape == (B, PROMPT_LEN + S, D)
    assert attention_mask.shape == (B, PROMPT_LEN + S)

    # Pure-JAX reference with identical Gumbel noise.
    g_ref = jax.random.gumbel(k_gumbel, (PROMPT_LEN, V), dtype=jnp.float32)
    prompt_ids_ref = jnp.argmax(fair_sent_dist + g_ref, axis=1)
    ref_prompt = emb_weight[prompt_ids_ref]                                  # (10, D)
    ref_tok = emb_weight[jnp.clip(input_ids, 0, V - 1)]                      # (B, S, D)

    # Exact row gathers -> bit-exact outputs (no MXU one-hot select anymore).
    assert jnp.array_equal(embeddings[:, PROMPT_LEN:, :], ref_tok)
    assert jnp.array_equal(embeddings[:, :PROMPT_LEN, :],
                           jnp.broadcast_to(ref_prompt[None], (B, PROMPT_LEN, D)))
    assert jnp.all(attention_mask[:, :PROMPT_LEN] == 1)
    assert jnp.array_equal(attention_mask[:, PROMPT_LEN:], attn_mask)

    print("KERNEL_OK")
</pallas_src>

<mosaic_0001>
module attributes {stable_mosaic.version = 11 : i64} {
  func.func @_gather_rows_kernel(%arg0: i32, %arg1: memref<48xi32, #tpu.memory_space<smem>>, %arg2: memref<256x128xf32, #tpu.memory_space<vmem>>, %arg3: memref<24x128xf32, #tpu.memory_space<vmem>>) attributes {dimension_semantics = [#tpu.dimension_semantics<parallel>], iteration_bounds = array<i64: 2>, scalar_prefetch = 1 : i64, scratch_operands = 0 : i64, tpu.core_type = #tpu.core_type<tc>, window_params = [{pipeline_mode = #tpu.pipeline_mode<synchronous>, transform_indices = @transform_0, window_bounds = array<i64: 256, 128>}, {transform_indices = @transform_1, window_bounds = array<i64: 24, 128>}]} {
    %c24_i32 = arith.constant 24 : i32
    %0 = arith.muli %arg0, %c24_i32 : i32
    %1 = tpu.iota {dimensions = array<i32: 0>} : vector<8x128xi32>
    %c0_i32 = arith.constant 0 : i32
    %c8_i32 = arith.constant 8 : i32
    %2 = arith.muli %c0_i32, %c8_i32 : i32
    %3 = tpu.assume_multiple %2, 8 : i32
    %4 = arith.addi %0, %3 : i32
    %5 = arith.index_cast %4 : i32 to index
    %6 = memref.load %arg1[%5] : memref<48xi32, #tpu.memory_space<smem>>
    %7 = arith.index_cast %6 : i32 to index
    %c0 = arith.constant 0 : index
    %8 = vector.load %arg2[%7, %c0] : memref<256x128xf32, #tpu.memory_space<vmem>>, vector<1x128xf32>
    %9 = vector.shape_cast %8 : vector<1x128xf32> to vector<1x128xf32>
    %10 = vector.broadcast %9 : vector<1x128xf32> to vector<8x128xf32>
    %11 = arith.addi %0, %3 : i32
    %c1_i32 = arith.constant 1 : i32
    %12 = arith.addi %11, %c1_i32 : i32
    %13 = arith.index_cast %12 : i32 to index
    %14 = memref.load %arg1[%13] : memref<48xi32, #tpu.memory_space<smem>>
    %15 = arith.index_cast %14 : i32 to index
    %c0_0 = arith.constant 0 : index
    %16 = vector.load %arg2[%15, %c0_0] : memref<256x128xf32, #tpu.memory_space<vmem>>, vector<1x128xf32>
    %17 = vector.shape_cast %16 : vector<1x128xf32> to vector<1x128xf32>
    %18 = vector.broadcast %17 : vector<1x128xf32> to vector<8x128xf32>
    %c1_i32_1 = arith.constant 1 : i32
    %19 = vector.broadcast %c1_i32_1 : i32 to vector<8x128xi32>
    %20 = arith.cmpi eq, %1, %19 : vector<8x128xi32>
    %21 = arith.select %20, %18, %10 : vector<8x128xi1>, vector<8x128xf32>
    %22 = arith.addi %0, %3 : i32
    %c2_i32 = arith.constant 2 : i32
    %23 = arith.addi %22, %c2_i32 : i32
    %24 = arith.index_cast %23 : i32 to index
    %25 = memref.load %arg1[%24] : memref<48xi32, #tpu.memory_space<smem>>
    %26 = arith.index_cast %25 : i32 to index
    %c0_2 = arith.constant 0 : index
    %27 = vector.load %arg2[%26, %c0_2] : memref<256x128xf32, #tpu.memory_space<vmem>>, vector<1x128xf32>
    %28 = vector.shape_cast %27 : vector<1x128xf32> to vector<1x128xf32>
    %29 = vector.broadcast %28 : vector<1x128xf32> to vector<8x128xf32>
    %c2_i32_3 = arith.constant 2 : i32
    %30 = vector.broadcast %c2_i32_3 : i32 to vector<8x128xi32>
    %31 = arith.cmpi eq, %1, %30 : vector<8x128xi32>
    %32 = arith.select %31, %29, %21 : vector<8x128xi1>, vector<8x128xf32>
    %33 = arith.addi %0, %3 : i32
    %c3_i32 = arith.constant 3 : i32
    %34 = arith.addi %33, %c3_i32 : i32
    %35 = arith.index_cast %34 : i32 to index
    %36 = memref.load %arg1[%35] : memref<48xi32, #tpu.memory_space<smem>>
    %37 = arith.index_cast %36 : i32 to index
    %c0_4 = arith.constant 0 : index
    %38 = vector.load %arg2[%37, %c0_4] : memref<256x128xf32, #tpu.memory_space<vmem>>, vector<1x128xf32>
    %39 = vector.shape_cast %38 : vector<1x128xf32> to vector<1x128xf32>
    %40 = vector.broadcast %39 : vector<1x128xf32> to vector<8x128xf32>
    %c3_i32_5 = arith.constant 3 : i32
    %41 = vector.broadcast %c3_i32_5 : i32 to vector<8x128xi32>
    %42 = arith.cmpi eq, %1, %41 : vector<8x128xi32>
    %43 = arith.select %42, %40, %32 : vector<8x128xi1>, vector<8x128xf32>
    %44 = arith.addi %0, %3 : i32
    %c4_i32 = arith.constant 4 : i32
    %45 = arith.addi %44, %c4_i32 : i32
    %46 = arith.index_cast %45 : i32 to index
    %47 = memref.load %arg1[%46] : memref<48xi32, #tpu.memory_space<smem>>
    %48 = arith.index_cast %47 : i32 to index
    %c0_6 = arith.constant 0 : index
    %49 = vector.load %arg2[%48, %c0_6] : memref<256x128xf32, #tpu.memory_space<vmem>>, vector<1x128xf32>
    %50 = vector.shape_cast %49 : vector<1x128xf32> to vector<1x128xf32>
    %51 = vector.broadcast %50 : vector<1x128xf32> to vector<8x128xf32>
    %c4_i32_7 = arith.constant 4 : i32
    %52 = vector.broadcast %c4_i32_7 : i32 to vector<8x128xi32>
    %53 = arith.cmpi eq, %1, %52 : vector<8x128xi32>
    %54 = arith.select %53, %51, %43 : vector<8x128xi1>, vector<8x128xf32>
    %55 = arith.addi %0, %3 : i32
    %c5_i32 = arith.constant 5 : i32
    %56 = arith.addi %55, %c5_i32 : i32
    %57 = arith.index_cast %56 : i32 to index
    %58 = memref.load %arg1[%57] : memref<48xi32, #tpu.memory_space<smem>>
    %59 = arith.index_cast %58 : i32 to index
    %c0_8 = arith.constant 0 : index
    %60 = vector.load %arg2[%59, %c0_8] : memref<256x128xf32, #tpu.memory_space<vmem>>, vector<1x128xf32>
    %61 = vector.shape_cast %60 : vector<1x128xf32> to vector<1x128xf32>
    %62 = vector.broadcast %61 : vector<1x128xf32> to vector<8x128xf32>
    %c5_i32_9 = arith.constant 5 : i32
    %63 = vector.broadcast %c5_i32_9 : i32 to vector<8x128xi32>
    %64 = arith.cmpi eq, %1, %63 : vector<8x128xi32>
    %65 = arith.select %64, %62, %54 : vector<8x128xi1>, vector<8x128xf32>
    %66 = arith.addi %0, %3 : i32
    %c6_i32 = arith.constant 6 : i32
    %67 = arith.addi %66, %c6_i32 : i32
    %68 = arith.index_cast %67 : i32 to index
    %69 = memref.load %arg1[%68] : memref<48xi32, #tpu.memory_space<smem>>
    %70 = arith.index_cast %69 : i32 to index
    %c0_10 = arith.constant 0 : index
    %71 = vector.load %arg2[%70, %c0_10] : memref<256x128xf32, #tpu.memory_space<vmem>>, vector<1x128xf32>
    %72 = vector.shape_cast %71 : vector<1x128xf32> to vector<1x128xf32>
    %73 = vector.broadcast %72 : vector<1x128xf32> to vector<8x128xf32>
    %c6_i32_11 = arith.constant 6 : i32
    %74 = vector.broadcast %c6_i32_11 : i32 to vector<8x128xi32>
    %75 = arith.cmpi eq, %1, %74 : vector<8x128xi32>
    %76 = arith.select %75, %73, %65 : vector<8x128xi1>, vector<8x128xf32>
    %77 = arith.addi %0, %3 : i32
    %c7_i32 = arith.constant 7 : i32
    %78 = arith.addi %77, %c7_i32 : i32
    %79 = arith.index_cast %78 : i32 to index
    %80 = memref.load %arg1[%79] : memref<48xi32, #tpu.memory_space<smem>>
    %81 = arith.index_cast %80 : i32 to index
    %c0_12 = arith.constant 0 : index
    %82 = vector.load %arg2[%81, %c0_12] : memref<256x128xf32, #tpu.memory_space<vmem>>, vector<1x128xf32>
    %83 = vector.shape_cast %82 : vector<1x128xf32> to vector<1x128xf32>
    %84 = vector.broadcast %83 : vector<1x128xf32> to vector<8x128xf32>
    %c7_i32_13 = arith.constant 7 : i32
    %85 = vector.broadcast %c7_i32_13 : i32 to vector<8x128xi32>
    %86 = arith.cmpi eq, %1, %85 : vector<8x128xi32>
    %87 = arith.select %86, %84, %76 : vector<8x128xi1>, vector<8x128xf32>
    %88 = arith.index_cast %3 : i32 to index
    %c0_14 = arith.constant 0 : index
    %89 = vector.load %arg3[%88, %c0_14] : memref<24x128xf32, #tpu.memory_space<vmem>>, vector<8x128xf32>
    tpu.vector_store %arg3[%88, %c0_14], %87 {strides = array<i32>} : memref<24x128xf32, #tpu.memory_space<vmem>>, vector<8x128xf32>,
    %c1_i32_15 = arith.constant 1 : i32
    %c8_i32_16 = arith.constant 8 : i32
    %90 = arith.muli %c1_i32_15, %c8_i32_16 : i32
    %91 = tpu.assume_multiple %90, 8 : i32
    %92 = arith.addi %0, %91 : i32
    %93 = arith.index_cast %92 : i32 to index
    %94 = memref.load %arg1[%93] : memref<48xi32, #tpu.memory_space<smem>>
    %95 = arith.index_cast %94 : i32 to index
    %c0_17 = arith.constant 0 : index
    %96 = vector.load %arg2[%95, %c0_17] : memref<256x128xf32, #tpu.memory_space<vmem>>, vector<1x128xf32>
    %97 = vector.shape_cast %96 : vector<1x128xf32> to vector<1x128xf32>
    %98 = vector.broadcast %97 : vector<1x128xf32> to vector<8x128xf32>
    %99 = arith.addi %0, %91 : i32
    %c1_i32_18 = arith.constant 1 : i32
    %100 = arith.addi %99, %c1_i32_18 : i32
    %101 = arith.index_cast %100 : i32 to index
    %102 = memref.load %arg1[%101] : memref<48xi32, #tpu.memory_space<smem>>
    %103 = arith.index_cast %102 : i32 to index
    %c0_19 = arith.constant 0 : index
    %104 = vector.load %arg2[%103, %c0_19] : memref<256x128xf32, #tpu.memory_space<vmem>>, vector<1x128xf32>
    %105 = vector.shape_cast %104 : vector<1x128xf32> to vector<1x128xf32>
    %106 = vector.broadcast %105 : vector<1x128xf32> to vector<8x128xf32>
    %c1_i32_20 = arith.constant 1 : i32
    %107 = vector.broadcast %c1_i32_20 : i32 to vector<8x128xi32>
    %108 = arith.cmpi eq, %1, %107 : vector<8x128xi32>
    %109 = arith.select %108, %106, %98 : vector<8x128xi1>, vector<8x128xf32>
    %110 = arith.addi %0, %91 : i32
    %c2_i32_21 = arith.constant 2 : i32
    %111 = arith.addi %110, %c2_i32_21 : i32
    %112 = arith.index_cast %111 : i32 to index
    %113 = memref.load %arg1[%112] : memref<48xi32, #tpu.memory_space<smem>>
    %114 = arith.index_cast %113 : i32 to index
    %c0_22 = arith.constant 0 : index
    %115 = vector.load %arg2[%114, %c0_22] : memref<256x128xf32, #tpu.memory_space<vmem>>, vector<1x128xf32>
    %116 = vector.shape_cast %115 : vector<1x128xf32> to vector<1x128xf32>
    %117 = vector.broadcast %116 : vector<1x128xf32> to vector<8x128xf32>
    %c2_i32_23 = arith.constant 2 : i32
    %118 = vector.broadcast %c2_i32_23 : i32 to vector<8x128xi32>
    %119 = arith.cmpi eq, %1, %118 : vector<8x128xi32>
    %120 = arith.select %119, %117, %109 : vector<8x128xi1>, vector<8x128xf32>
    %121 = arith.addi %0, %91 : i32
    %c3_i32_24 = arith.constant 3 : i32
    %122 = arith.addi %121, %c3_i32_24 : i32
    %123 = arith.index_cast %122 : i32 to index
    %124 = memref.load %arg1[%123] : memref<48xi32, #tpu.memory_space<smem>>
    %125 = arith.index_cast %124 : i32 to index
    %c0_25 = arith.constant 0 : index
    %126 = vector.load %arg2[%125, %c0_25] : memref<256x128xf32, #tpu.memory_space<vmem>>, vector<1x128xf32>
    %127 = vector.shape_cast %126 : vector<1x128xf32> to vector<1x128xf32>
    %128 = vector.broadcast %127 : vector<1x128xf32> to vector<8x128xf32>
    %c3_i32_26 = arith.constant 3 : i32
    %129 = vector.broadcast %c3_i32_26 : i32 to vector<8x128xi32>
    %130 = arith.cmpi eq, %1, %129 : vector<8x128xi32>
    %131 = arith.select %130, %128, %120 : vector<8x128xi1>, vector<8x128xf32>
    %132 = arith.addi %0, %91 : i32
    %c4_i32_27 = arith.constant 4 : i32
    %133 = arith.addi %132, %c4_i32_27 : i32
    %134 = arith.index_cast %133 : i32 to index
    %135 = memref.load %arg1[%134] : memref<48xi32, #tpu.memory_space<smem>>
    %136 = arith.index_cast %135 : i32 to index
    %c0_28 = arith.constant 0 : index
    %137 = vector.load %arg2[%136, %c0_28] : memref<256x128xf32, #tpu.memory_space<vmem>>, vector<1x128xf32>
    %138 = vector.shape_cast %137 : vector<1x128xf32> to vector<1x128xf32>
    %139 = vector.broadcast %138 : vector<1x128xf32> to vector<8x128xf32>
    %c4_i32_29 = arith.constant 4 : i32
    %140 = vector.broadcast %c4_i32_29 : i32 to vector<8x128xi32>
    %141 = arith.cmpi eq, %1, %140 : vector<8x128xi32>
    %142 = arith.select %141, %139, %131 : vector<8x128xi1>, vector<8x128xf32>
    %143 = arith.addi %0, %91 : i32
    %c5_i32_30 = arith.constant 5 : i32
    %144 = arith.addi %143, %c5_i32_30 : i32
    %145 = arith.index_cast %144 : i32 to index
    %146 = memref.load %arg1[%145] : memref<48xi32, #tpu.memory_space<smem>>
    %147 = arith.index_cast %146 : i32 to index
    %c0_31 = arith.constant 0 : index
    %148 = vector.load %arg2[%147, %c0_31] : memref<256x128xf32, #tpu.memory_space<vmem>>, vector<1x128xf32>
    %149 = vector.shape_cast %148 : vector<1x128xf32> to vector<1x128xf32>
    %150 = vector.broadcast %149 : vector<1x128xf32> to vector<8x128xf32>
    %c5_i32_32 = arith.constant 5 : i32
    %151 = vector.broadcast %c5_i32_32 : i32 to vector<8x128xi32>
    %152 = arith.cmpi eq, %1, %151 : vector<8x128xi32>
    %153 = arith.select %152, %150, %142 : vector<8x128xi1>, vector<8x128xf32>
    %154 = arith.addi %0, %91 : i32
    %c6_i32_33 = arith.constant 6 : i32
    %155 = arith.addi %154, %c6_i32_33 : i32
    %156 = arith.index_cast %155 : i32 to index
    %157 = memref.load %arg1[%156] : memref<48xi32, #tpu.memory_space<smem>>
    %158 = arith.index_cast %157 : i32 to index
    %c0_34 = arith.constant 0 : index
    %159 = vector.load %arg2[%158, %c0_34] : memref<256x128xf32, #tpu.memory_space<vmem>>, vector<1x128xf32>
    %160 = vector.shape_cast %159 : vector<1x128xf32> to vector<1x128xf32>
    %161 = vector.broadcast %160 : vector<1x128xf32> to vector<8x128xf32>
    %c6_i32_35 = arith.constant 6 : i32
    %162 = vector.broadcast %c6_i32_35 : i32 to vector<8x128xi32>
    %163 = arith.cmpi eq, %1, %162 : vector<8x128xi32>
    %164 = arith.select %163, %161, %153 : vector<8x128xi1>, vector<8x128xf32>
    %165 = arith.addi %0, %91 : i32
    %c7_i32_36 = arith.constant 7 : i32
    %166 = arith.addi %165, %c7_i32_36 : i32
    %167 = arith.index_cast %166 : i32 to index
    %168 = memref.load %arg1[%167] : memref<48xi32, #tpu.memory_space<smem>>
    %169 = arith.index_cast %168 : i32 to index
    %c0_37 = arith.constant 0 : index
    %170 = vector.load %arg2[%169, %c0_37] : memref<256x128xf32, #tpu.memory_space<vmem>>, vector<1x128xf32>
    %171 = vector.shape_cast %170 : vector<1x128xf32> to vector<1x128xf32>
    %172 = vector.broadcast %171 : vector<1x128xf32> to vector<8x128xf32>
    %c7_i32_38 = arith.constant 7 : i32
    %173 = vector.broadcast %c7_i32_38 : i32 to vector<8x128xi32>
    %174 = arith.cmpi eq, %1, %173 : vector<8x128xi32>
    %175 = arith.select %174, %172, %164 : vector<8x128xi1>, vector<8x128xf32>
    %176 = arith.index_cast %91 : i32 to index
    %c0_39 = arith.constant 0 : index
    %177 = vector.load %arg3[%176, %c0_39] : memref<24x128xf32, #tpu.memory_space<vmem>>, vector<8x128xf32>
    tpu.vector_store %arg3[%176, %c0_39], %175 {strides = array<i32>} : memref<24x128xf32, #tpu.memory_space<vmem>>, vector<8x128xf32>,
    %c2_i32_40 = arith.constant 2 : i32
    %c8_i32_41 = arith.constant 8 : i32
    %178 = arith.muli %c2_i32_40, %c8_i32_41 : i32
    %179 = tpu.assume_multiple %178, 8 : i32
    %180 = arith.addi %0, %179 : i32
    %181 = arith.index_cast %180 : i32 to index
    %182 = memref.load %arg1[%181] : memref<48xi32, #tpu.memory_space<smem>>
    %183 = arith.index_cast %182 : i32 to index
    %c0_42 = arith.constant 0 : index
    %184 = vector.load %arg2[%183, %c0_42] : memref<256x128xf32, #tpu.memory_space<vmem>>, vector<1x128xf32>
    %185 = vector.shape_cast %184 : vector<1x128xf32> to vector<1x128xf32>
    %186 = vector.broadcast %185 : vector<1x128xf32> to vector<8x128xf32>
    %187 = arith.addi %0, %179 : i32
    %c1_i32_43 = arith.constant 1 : i32
    %188 = arith.addi %187, %c1_i32_43 : i32
    %189 = arith.index_cast %188 : i32 to index
    %190 = memref.load %arg1[%189] : memref<48xi32, #tpu.memory_space<smem>>
    %191 = arith.index_cast %190 : i32 to index
    %c0_44 = arith.constant 0 : index
    %192 = vector.load %arg2[%191, %c0_44] : memref<256x128xf32, #tpu.memory_space<vmem>>, vector<1x128xf32>
    %193 = vector.shape_cast %192 : vector<1x128xf32> to vector<1x128xf32>
    %194 = vector.broadcast %193 : vector<1x128xf32> to vector<8x128xf32>
    %c1_i32_45 = arith.constant 1 : i32
    %195 = vector.broadcast %c1_i32_45 : i32 to vector<8x128xi32>
    %196 = arith.cmpi eq, %1, %195 : vector<8x128xi32>
    %197 = arith.select %196, %194, %186 : vector<8x128xi1>, vector<8x128xf32>
    %198 = arith.addi %0, %179 : i32
    %c2_i32_46 = arith.constant 2 : i32
    %199 = arith.addi %198, %c2_i32_46 : i32
    %200 = arith.index_cast %199 : i32 to index
    %201 = memref.load %arg1[%200] : memref<48xi32, #tpu.memory_space<smem>>
    %202 = arith.index_cast %201 : i32 to index
    %c0_47 = arith.constant 0 : index
    %203 = vector.load %arg2[%202, %c0_47] : memref<256x128xf32, #tpu.memory_space<vmem>>, vector<1x128xf32>
    %204 = vector.shape_cast %203 : vector<1x128xf32> to vector<1x128xf32>
    %205 = vector.broadcast %204 : vector<1x128xf32> to vector<8x128xf32>
    %c2_i32_48 = arith.constant 2 : i32
    %206 = vector.broadcast %c2_i32_48 : i32 to vector<8x128xi32>
    %207 = arith.cmpi eq, %1, %206 : vector<8x128xi32>
    %208 = arith.select %207, %205, %197 : vector<8x128xi1>, vector<8x128xf32>
    %209 = arith.addi %0, %179 : i32
    %c3_i32_49 = arith.constant 3 : i32
    %210 = arith.addi %209, %c3_i32_49 : i32
    %211 = arith.index_cast %210 : i32 to index
    %212 = memref.load %arg1[%211] : memref<48xi32, #tpu.memory_space<smem>>
    %213 = arith.index_cast %212 : i32 to index
    %c0_50 = arith.constant 0 : index
    %214 = vector.load %arg2[%213, %c0_50] : memref<256x128xf32, #tpu.memory_space<vmem>>, vector<1x128xf32>
    %215 = vector.shape_cast %214 : vector<1x128xf32> to vector<1x128xf32>
    %216 = vector.broadcast %215 : vector<1x128xf32> to vector<8x128xf32>
    %c3_i32_51 = arith.constant 3 : i32
    %217 = vector.broadcast %c3_i32_51 : i32 to vector<8x128xi32>
    %218 = arith.cmpi eq, %1, %217 : vector<8x128xi32>
    %219 = arith.select %218, %216, %208 : vector<8x128xi1>, vector<8x128xf32>
    %220 = arith.addi %0, %179 : i32
    %c4_i32_52 = arith.constant 4 : i32
    %221 = arith.addi %220, %c4_i32_52 : i32
    %222 = arith.index_cast %221 : i32 to index
    %223 = memref.load %arg1[%222] : memref<48xi32, #tpu.memory_space<smem>>
    %224 = arith.index_cast %223 : i32 to index
    %c0_53 = arith.constant 0 : index
    %225 = vector.load %arg2[%224, %c0_53] : memref<256x128xf32, #tpu.memory_space<vmem>>, vector<1x128xf32>
    %226 = vector.shape_cast %225 : vector<1x128xf32> to vector<1x128xf32>
    %227 = vector.broadcast %226 : vector<1x128xf32> to vector<8x128xf32>
    %c4_i32_54 = arith.constant 4 : i32
    %228 = vector.broadcast %c4_i32_54 : i32 to vector<8x128xi32>
    %229 = arith.cmpi eq, %1, %228 : vector<8x128xi32>
    %230 = arith.select %229, %227, %219 : vector<8x128xi1>, vector<8x128xf32>
    %231 = arith.addi %0, %179 : i32
    %c5_i32_55 = arith.constant 5 : i32
    %232 = arith.addi %231, %c5_i32_55 : i32
    %233 = arith.index_cast %232 : i32 to index
    %234 = memref.load %arg1[%233] : memref<48xi32, #tpu.memory_space<smem>>
    %235 = arith.index_cast %234 : i32 to index
    %c0_56 = arith.constant 0 : index
    %236 = vector.load %arg2[%235, %c0_56] : memref<256x128xf32, #tpu.memory_space<vmem>>, vector<1x128xf32>
    %237 = vector.shape_cast %236 : vector<1x128xf32> to vector<1x128xf32>
    %238 = vector.broadcast %237 : vector<1x128xf32> to vector<8x128xf32>
    %c5_i32_57 = arith.constant 5 : i32
    %239 = vector.broadcast %c5_i32_57 : i32 to vector<8x128xi32>
    %240 = arith.cmpi eq, %1, %239 : vector<8x128xi32>
    %241 = arith.select %240, %238, %230 : vector<8x128xi1>, vector<8x128xf32>
    %242 = arith.addi %0, %179 : i32
    %c6_i32_58 = arith.constant 6 : i32
    %243 = arith.addi %242, %c6_i32_58 : i32
    %244 = arith.index_cast %243 : i32 to index
    %245 = memref.load %arg1[%244] : memref<48xi32, #tpu.memory_space<smem>>
    %246 = arith.index_cast %245 : i32 to index
    %c0_59 = arith.constant 0 : index
    %247 = vector.load %arg2[%246, %c0_59] : memref<256x128xf32, #tpu.memory_space<vmem>>, vector<1x128xf32>
    %248 = vector.shape_cast %247 : vector<1x128xf32> to vector<1x128xf32>
    %249 = vector.broadcast %248 : vector<1x128xf32> to vector<8x128xf32>
    %c6_i32_60 = arith.constant 6 : i32
    %250 = vector.broadcast %c6_i32_60 : i32 to vector<8x128xi32>
    %251 = arith.cmpi eq, %1, %250 : vector<8x128xi32>
    %252 = arith.select %251, %249, %241 : vector<8x128xi1>, vector<8x128xf32>
    %253 = arith.addi %0, %179 : i32
    %c7_i32_61 = arith.constant 7 : i32
    %254 = arith.addi %253, %c7_i32_61 : i32
    %255 = arith.index_cast %254 : i32 to index
    %256 = memref.load %arg1[%255] : memref<48xi32, #tpu.memory_space<smem>>
    %257 = arith.index_cast %256 : i32 to index
    %c0_62 = arith.constant 0 : index
    %258 = vector.load %arg2[%257, %c0_62] : memref<256x128xf32, #tpu.memory_space<vmem>>, vector<1x128xf32>
    %259 = vector.shape_cast %258 : vector<1x128xf32> to vector<1x128xf32>
    %260 = vector.broadcast %259 : vector<1x128xf32> to vector<8x128xf32>
    %c7_i32_63 = arith.constant 7 : i32
    %261 = vector.broadcast %c7_i32_63 : i32 to vector<8x128xi32>
    %262 = arith.cmpi eq, %1, %261 : vector<8x128xi32>
    %263 = arith.select %262, %260, %252 : vector<8x128xi1>, vector<8x128xf32>
    %264 = arith.index_cast %179 : i32 to index
    %c0_64 = arith.constant 0 : index
    %265 = vector.load %arg3[%264, %c0_64] : memref<24x128xf32, #tpu.memory_space<vmem>>, vector<8x128xf32>
    tpu.vector_store %arg3[%264, %c0_64], %263 {strides = array<i32>} : memref<24x128xf32, #tpu.memory_space<vmem>>, vector<8x128xf32>,
    %c3_i32_65 = arith.constant 3 : i32
    return
  }
  func.func @transform_0(%arg0: i32, %arg1: memref<48xi32, #tpu.memory_space<smem>>) -> (i32, i32) {
    %c0_i32 = arith.constant 0 : i32
    %c0_i32_0 = arith.constant 0 : i32
    %c0_i32_1 = arith.constant 0 : i32
    return %c0_i32, %c0_i32_0 : i32, i32
  }
  func.func @transform_1(%arg0: i32, %arg1: memref<48xi32, #tpu.memory_space<smem>>) -> (i32, i32) {
    %c0_i32 = arith.constant 0 : i32
    %c0_i32_0 = arith.constant 0 : i32
    return %arg0, %c0_i32 : i32, i32
  }
}

</mosaic_0001>

<llo_original>
// kernel: tpu_custom_call.1
$region0: #{tpu_custom_call.1}
  #allocation0 [shape = 'u32[]', space=smem, size = 0x4, offset = 0x4, fixed_abs, tag = 'smem constant byte address 0x4 - core index']
  #allocation1 [shape = 'u32[144,128]{1,0:T(1,128)}', space=vmem, size = 0x12000, scoped, tag = 'internal scratch']
  #allocation2 [shape = 's32[1]{0}', space=sflag, size = 0x4, scoped, tag = 'scoped memory for tpu_custom_call.1']
  #allocation3 [shape = 'u8[512]{0}', space=smem, size = 0x200, scoped, tag = 'prefetched SMEM operand 0']
  %s0 = inlined_call_operand.hbm [shape: s32[48], index: 0, kind: input, shape index: {}]
  %s1 = inlined_call_operand.hbm [shape: f32[256,128], index: 1, kind: input, shape index: {}]
  %s2 = inlined_call_operand.hbm [shape: f32[48,128], index: 2, kind: output, shape index: {}]
  %s3 = sld [smem:[#allocation0]]
  $region41: #{tpu_custom_call.1} parent=0
    _
  %s5 = ssub.s32 1, %s3
  %s6 = scalar_select 0, %s5, %s3
  %8 = dma.hbm_to_smem %s0, 16, [#allocation3], [#allocation2]
  %9 = dma.done [#allocation2], 16
  %10 = sfence
  $region1: #{tpu_custom_call.1} parent=0
    #allocation4 [shape = 'u8[131072]{0}', space=vmem, size = 0x20000, scoped, tag = 'input window, operand 1, single buffered']
    #allocation5 [shape = 's32[2]{0}', space=sflag, size = 0x8, scoped, tag = 'scoped memory for tpu_custom_call.1']
    #allocation6 [shape = 's32[2]{0}', space=sflag, size = 0x8, scoped, tag = 'scoped memory for tpu_custom_call.1']
    #allocation7 [shape = 'u8[24576]{0}', space=vmem, size = 0x6000, scoped, tag = 'output window, operand 0']
    %11 = vsyncpa [#allocation5], 0
    %12 = vsyncpa [#allocation6], 0
    %s13 = scalar_lea.sflag [#allocation6], 1
    %14 = vsyncpa %s13, 0
    loop: start=0, step=1, limit=4
    $region2: #{tpu_custom_call.1} parent=1 // loop_pre_header
      _
    $region3: #{tpu_custom_call.1} parent=1 // loop_header
      %s16 = sphi 0, %s20
      %p17 = scmp.ge.s32.totalorder %s16, 4
      %s24 = sphi 0, %s24
      %s26 = sphi 0, %s24
      %s27 = sphi 0, %s26
      %s41 = sphi 0, %s27
      %s47 = sphi 0, %s49
      %s50 = sphi 0, %s47
      %s51 = sphi 0, %s50
      %s67 = sphi 0, %s51
    $region4: #{tpu_custom_call.1} parent=1 // loop_header_branch
      %19 = sbr.rel (%p17) target = $region8
    $region5: #{tpu_custom_call.1} parent=1 // loop_body
      %s21 = ssub.s32 %s16, 1
      %s22 = ssub.s32 %s16, 2
      %s23 = sadd.s32 %s16, 1
      %s25 = sadd.s32 %s24, 1
      %p28 = scmp.eq.s32.totalorder %s16, 1
      %p29 = scmp.ne.s32.totalorder %s24, %s26
      %p30 = scmp.eq.s32.totalorder %s16, 0
      %p31 = por %p29, %p30
      %p32 = scmp.ne.s32.totalorder %s24, %s26
      %p33 = scmp.eq.s32.totalorder %s21, 1
      %p34 = por %p32, %p33
      %p35 = scmp.ne.s32.totalorder %s26, %s27
      %p36 = scmp.eq.s32.totalorder %s21, 0
      %p37 = por %p35, %p36
      %p38 = scmp.ne.s32.totalorder %s26, %s27
      %p39 = scmp.eq.s32.totalorder %s22, 1
      %p40 = por %p38, %p39
      %p42 = scmp.ne.s32.totalorder %s27, %s41
      %p43 = scmp.eq.s32.totalorder %s22, 0
      %p44 = por %p42, %p43
      %s45 = ssub.s32 %s16, %s23
      %p46 = scmp.eq.s32.totalorder %s45, 0
      %s48 = sadd.s32 %s47, 1
      %s49 = scalar_select %p46, %s47, %s48
      %p52 = pneg %p46
      %p53 = scmp.eq.s32.totalorder %s16, 1
      %p54 = por %p52, %p53
      %p55 = scmp.ne.s32.totalorder %s47, %s50
      %p56 = scmp.eq.s32.totalorder %s16, 0
      %p57 = por %p55, %p56
      %p58 = scmp.ne.s32.totalorder %s47, %s50
      %p59 = scmp.eq.s32.totalorder %s21, 1
      %p60 = por %p58, %p59
      %p61 = scmp.ne.s32.totalorder %s50, %s51
      %p62 = scmp.eq.s32.totalorder %s21, 0
      %p63 = por %p61, %p62
      %p64 = scmp.ne.s32.totalorder %s50, %s51
      %p65 = scmp.eq.s32.totalorder %s22, 1
      %p66 = por %p64, %p65
      %p68 = scmp.ne.s32.totalorder %s51, %s67
      %p69 = scmp.eq.s32.totalorder %s22, 0
      %p70 = por %p68, %p69
      %p71 = scmp.le.s32.totalorder 1, %s16
      %p72 = scmp.lt.s32.totalorder %s16, 3
      %p73 = pnand %p71, %p72
      %p74 = pneg %p73
      // Predicated region
      $region9: #{tpu_custom_call.1} parent=5 // pred_check
        _
      $region10: #{tpu_custom_call.1} parent=5 // pred_check_branch
        %76 = sbr.rel (%p73) target = $region12
      $region11: #{tpu_custom_call.1} parent=5 // pred_region
        %s77 = ssub.s32 %s16, 1
        // Predicated region
        $region13: #{tpu_custom_call.1} parent=11 // pred_check
          %p78 = pneg %p37
        $region14: #{tpu_custom_call.1} parent=11 // pred_check_branch
          %80 = sbr.rel (%p78) target = $region16
        $region15: #{tpu_custom_call.1} parent=11 // pred_region
          %s82 = ssub.s32 4096, 4096
          %83 = vsyncadd [#allocation5], %s82
          %s84 = sshll.u32 [#allocation4], 4
          %s85 = int_to_ptr.vmem [resolvable:$true] %s84
          %90 = dma.hbm_to_vmem [thread:$0]  %s1, 4096, %s85, [#allocation5], 128, 128, 8
        $region16: #{tpu_custom_call.1} parent=11 // pred_fallthru
          _
      $region12: #{tpu_custom_call.1} parent=5 // pred_fallthru
        _
      %p91 = scmp.lt.s32.totalorder %s16, 2
      // Predicated region
      $region17: #{tpu_custom_call.1} parent=5 // pred_check
        %p92 = pneg %p91
      $region18: #{tpu_custom_call.1} parent=5 // pred_check_branch
        %94 = sbr.rel (%p92) target = $region20
      $region19: #{tpu_custom_call.1} parent=5 // pred_region
        _
      $region20: #{tpu_custom_call.1} parent=5 // pred_fallthru
        _
      %p95 = scmp.le.s32.totalorder 1, %s16
      %p96 = scmp.lt.s32.totalorder %s16, 3
      %p97 = pnand %p95, %p96
      %p98 = pneg %p97
      // Predicated region
      $region21: #{tpu_custom_call.1} parent=5 // pred_check
        _
      $region22: #{tpu_custom_call.1} parent=5 // pred_check_branch
        %100 = sbr.rel (%p97) target = $region24
      $region23: #{tpu_custom_call.1} parent=5 // pred_region
        %s101 = ssub.s32 %s16, 1
        // Predicated region
        $region25: #{tpu_custom_call.1} parent=23 // pred_check
          %p102 = pneg %p37
        $region26: #{tpu_custom_call.1} parent=23 // pred_check_branch
          %104 = sbr.rel (%p102) target = $region28
        $region27: #{tpu_custom_call.1} parent=23 // pred_region
          %105 = dma.done [#allocation5], 4096
        $region28: #{tpu_custom_call.1} parent=23 // pred_fallthru
          _
        %p106 = pneg %p37
        %p107 = pneg %p34
        %p108 = pneg %p63
        %p109 = pneg %p60
        %s110 = sand.u32 %s50, 1
        %s111 = scalar_lea.sflag [#allocation6], %s110
        %s112 = sand.u32 %s50, 1
        %s113 = smul.addr %s112, 24
        %s114 = scalar_lea.vmem [#allocation7], %s113
        %s115 = smul.u32 3, %s21
        %s116 = smul.u32 %s21, 24
        %v117 = vlaneseq
        %v118 = vshrl.u32 %v117, 7
        %s119 = sadd.s32 %s116, 0
        %s120 = sld [smem:[#allocation3 + %s119]]
        %s121 = scalar_lea.vmem [#allocation4], %s120
        %v122 = vld [vmem:[%s121] sm:$0x1]
        %v123 = vlaneseq
        %v124 = vshrl.u32 %v123, 7
        %v125 = vsub.s32 0, %v124
        %v126 = vrot.slane %v122, %v125
        %s127 = sadd.s32 %s119, 1
        %s128 = sld [smem:[#allocation3 + %s127]]
        %s129 = scalar_lea.vmem [#allocation4], %s128
        %v130 = vld [vmem:[%s129] sm:$0x1]
        %v131 = vlaneseq
        %v132 = vshrl.u32 %v131, 7
        %v133 = vsub.s32 0, %v132
        %v134 = vrot.slane %v130, %v133
        %vm135 = vcmp.eq.s32.totalorder %v118, 1
        %v136 = vsel %vm135, %v134, %v126
        %s137 = sadd.s32 %s119, 2
        %s138 = sld [smem:[#allocation3 + %s137]]
        %s139 = scalar_lea.vmem [#allocation4], %s138
        %v140 = vld [vmem:[%s139] sm:$0x1]
        %v141 = vlaneseq
        %v142 = vshrl.u32 %v141, 7
        %v143 = vsub.s32 0, %v142
        %v144 = vrot.slane %v140, %v143
        %vm145 = vcmp.eq.s32.totalorder %v118, 2
        %v146 = vsel %vm145, %v144, %v136
        %s147 = sadd.s32 %s119, 3
        %s148 = sld [smem:[#allocation3 + %s147]]
        %s149 = scalar_lea.vmem [#allocation4], %s148
        %v150 = vld [vmem:[%s149] sm:$0x1]
        %v151 = vlaneseq
        %v152 = vshrl.u32 %v151, 7
        %v153 = vsub.s32 0, %v152
        %v154 = vrot.slane %v150, %v153
        %vm155 = vcmp.eq.s32.totalorder %v118, 3
        %v156 = vsel %vm155, %v154, %v146
        %s157 = sadd.s32 %s119, 4
        %s158 = sld [smem:[#allocation3 + %s157]]
        %s159 = scalar_lea.vmem [#allocation4], %s158
        %v160 = vld [vmem:[%s159] sm:$0x1]
        %v161 = vlaneseq
        %v162 = vshrl.u32 %v161, 7
        %v163 = vsub.s32 0, %v162
        %v164 = vrot.slane %v160, %v163
        %vm165 = vcmp.eq.s32.totalorder %v118, 4
        %v166 = vsel %vm165, %v164, %v156
        %s167 = sadd.s32 %s119, 5
        %s168 = sld [smem:[#allocation3 + %s167]]
        %s169 = scalar_lea.vmem [#allocation4], %s168
        %v170 = vld [vmem:[%s169] sm:$0x1]
        %v171 = vlaneseq
        %v172 = vshrl.u32 %v171, 7
        %v173 = vsub.s32 0, %v172
        %v174 = vrot.slane %v170, %v173
        %vm175 = vcmp.eq.s32.totalorder %v118, 5
        %v176 = vsel %vm175, %v174, %v166
        %s177 = sadd.s32 %s119, 6
        %s178 = sld [smem:[#allocation3 + %s177]]
        %s179 = scalar_lea.vmem [#allocation4], %s178
        %v180 = vld [vmem:[%s179] sm:$0x1]
        %v181 = vlaneseq
        %v182 = vshrl.u32 %v181, 7
        %v183 = vsub.s32 0, %v182
        %v184 = vrot.slane %v180, %v183
        %vm185 = vcmp.eq.s32.totalorder %v118, 6
        %v186 = vsel %vm185, %v184, %v176
        %s187 = sadd.s32 %s119, 7
        %s188 = sld [smem:[#allocation3 + %s187]]
        %s189 = scalar_lea.vmem [#allocation4], %s188
        %v190 = vld [vmem:[%s189] sm:$0x1]
        %v191 = vlaneseq
        %v192 = vshrl.u32 %v191, 7
        %v193 = vsub.s32 0, %v192
        %v194 = vrot.slane %v190, %v193
        %vm195 = vcmp.eq.s32.totalorder %v118, 7
        %v196 = vsel %vm195, %v194, %v186
        %197 = vst [vmem:[%s114] sm:$0xff] %v196
        %s198 = sadd.s32 %s116, 8
        %s199 = sld [smem:[#allocation3 + %s198]]
        %s200 = scalar_lea.vmem [#allocation4], %s199
        %v201 = vld [vmem:[%s200] sm:$0x1]
        %v202 = vlaneseq
        %v203 = vshrl.u32 %v202, 7
        %v204 = vsub.s32 0, %v203
        %v205 = vrot.slane %v201, %v204
        %s206 = sadd.s32 %s198, 1
        %s207 = sld [smem:[#allocation3 + %s206]]
        %s208 = scalar_lea.vmem [#allocation4], %s207
        %v209 = vld [vmem:[%s208] sm:$0x1]
        %v210 = vlaneseq
        %v211 = vshrl.u32 %v210, 7
        %v212 = vsub.s32 0, %v211
        %v213 = vrot.slane %v209, %v212
        %v214 = vsel %vm135, %v213, %v205
        %s215 = sadd.s32 %s198, 2
        %s216 = sld [smem:[#allocation3 + %s215]]
        %s217 = scalar_lea.vmem [#allocation4], %s216
        %v218 = vld [vmem:[%s217] sm:$0x1]
        %v219 = vlaneseq
        %v220 = vshrl.u32 %v219, 7
        %v221 = vsub.s32 0, %v220
        %v222 = vrot.slane %v218, %v221
        %v223 = vsel %vm145, %v222, %v214
        %s224 = sadd.s32 %s198, 3
        %s225 = sld [smem:[#allocation3 + %s224]]
        %s226 = scalar_lea.vmem [#allocation4], %s225
        %v227 = vld [vmem:[%s226] sm:$0x1]
        %v228 = vlaneseq
        %v229 = vshrl.u32 %v228, 7
        %v230 = vsub.s32 0, %v229
        %v231 = vrot.slane %v227, %v230
        %v232 = vsel %vm155, %v231, %v223
        %s233 = sadd.s32 %s198, 4
        %s234 = sld [smem:[#allocation3 + %s233]]
        %s235 = scalar_lea.vmem [#allocation4], %s234
        %v236 = vld [vmem:[%s235] sm:$0x1]
        %v237 = vlaneseq
        %v238 = vshrl.u32 %v237, 7
        %v239 = vsub.s32 0, %v238
        %v240 = vrot.slane %v236, %v239
        %v241 = vsel %vm165, %v240, %v232
        %s242 = sadd.s32 %s198, 5
        %s243 = sld [smem:[#allocation3 + %s242]]
        %s244 = scalar_lea.vmem [#allocation4], %s243
        %v245 = vld [vmem:[%s244] sm:$0x1]
        %v246 = vlaneseq
        %v247 = vshrl.u32 %v246, 7
        %v248 = vsub.s32 0, %v247
        %v249 = vrot.slane %v245, %v248
        %v250 = vsel %vm175, %v249, %v241
        %s251 = sadd.s32 %s198, 6
        %s252 = sld [smem:[#allocation3 + %s251]]
        %s253 = scalar_lea.vmem [#allocation4], %s252
        %v254 = vld [vmem:[%s253] sm:$0x1]
        %v255 = vlaneseq
        %v256 = vshrl.u32 %v255, 7
        %v257 = vsub.s32 0, %v256
        %v258 = vrot.slane %v254, %v257
        %v259 = vsel %vm185, %v258, %v250
        %s260 = sadd.s32 %s198, 7
        %s261 = sld [smem:[#allocation3 + %s260]]
        %s262 = scalar_lea.vmem [#allocation4], %s261
        %v263 = vld [vmem:[%s262] sm:$0x1]
        %v264 = vlaneseq
        %v265 = vshrl.u32 %v264, 7
        %v266 = vsub.s32 0, %v265
        %v267 = vrot.slane %v263, %v266
        %v268 = vsel %vm195, %v267, %v259
        %s269 = scalar_lea.vmem %s114, 8 [#allocation7]
        %270 = vst [vmem:[%s269] sm:$0xff] %v268
        %s271 = sadd.s32 %s116, 16
        %s272 = sld [smem:[#allocation3 + %s271]]
        %s273 = scalar_lea.vmem [#allocation4], %s272
        %v274 = vld [vmem:[%s273] sm:$0x1]
        %v275 = vlaneseq
        %v276 = vshrl.u32 %v275, 7
        %v277 = vsub.s32 0, %v276
        %v278 = vrot.slane %v274, %v277
        %s279 = sadd.s32 %s271, 1
        %s280 = sld [smem:[#allocation3 + %s279]]
        %s281 = scalar_lea.vmem [#allocation4], %s280
        %v282 = vld [vmem:[%s281] sm:$0x1]
        %v283 = vlaneseq
        %v284 = vshrl.u32 %v283, 7
        %v285 = vsub.s32 0, %v284
        %v286 = vrot.slane %v282, %v285
        %v287 = vsel %vm135, %v286, %v278
        %s288 = sadd.s32 %s271, 2
        %s289 = sld [smem:[#allocation3 + %s288]]
        %s290 = scalar_lea.vmem [#allocation4], %s289
        %v291 = vld [vmem:[%s290] sm:$0x1]
        %v292 = vlaneseq
        %v293 = vshrl.u32 %v292, 7
        %v294 = vsub.s32 0, %v293
        %v295 = vrot.slane %v291, %v294
        %v296 = vsel %vm145, %v295, %v287
        %s297 = sadd.s32 %s271, 3
        %s298 = sld [smem:[#allocation3 + %s297]]
        %s299 = scalar_lea.vmem [#allocation4], %s298
        %v300 = vld [vmem:[%s299] sm:$0x1]
        %v301 = vlaneseq
        %v302 = vshrl.u32 %v301, 7
        %v303 = vsub.s32 0, %v302
        %v304 = vrot.slane %v300, %v303
        %v305 = vsel %vm155, %v304, %v296
        %s306 = sadd.s32 %s271, 4
        %s307 = sld [smem:[#allocation3 + %s306]]
        %s308 = scalar_lea.vmem [#allocation4], %s307
        %v309 = vld [vmem:[%s308] sm:$0x1]
        %v310 = vlaneseq
        %v311 = vshrl.u32 %v310, 7
        %v312 = vsub.s32 0, %v311
        %v313 = vrot.slane %v309, %v312
        %v314 = vsel %vm165, %v313, %v305
        %s315 = sadd.s32 %s271, 5
        %s316 = sld [smem:[#allocation3 + %s315]]
        %s317 = scalar_lea.vmem [#allocation4], %s316
        %v318 = vld [vmem:[%s317] sm:$0x1]
        %v319 = vlaneseq
        %v320 = vshrl.u32 %v319, 7
        %v321 = vsub.s32 0, %v320
        %v322 = vrot.slane %v318, %v321
        %v323 = vsel %vm175, %v322, %v314
        %s324 = sadd.s32 %s271, 6
        %s325 = sld [smem:[#allocation3 + %s324]]
        %s326 = scalar_lea.vmem [#allocation4], %s325
        %v327 = vld [vmem:[%s326] sm:$0x1]
        %v328 = vlaneseq
        %v329 = vshrl.u32 %v328, 7
        %v330 = vsub.s32 0, %v329
        %v331 = vrot.slane %v327, %v330
        %v332 = vsel %vm185, %v331, %v323
        %s333 = sadd.s32 %s271, 7
        %s334 = sld [smem:[#allocation3 + %s333]]
        %s335 = scalar_lea.vmem [#allocation4], %s334
        %v336 = vld [vmem:[%s335] sm:$0x1]
        %v337 = vlaneseq
        %v338 = vshrl.u32 %v337, 7
        %v339 = vsub.s32 0, %v338
        %v340 = vrot.slane %v336, %v339
        %v341 = vsel %vm195, %v340, %v332
        %s342 = scalar_lea.vmem %s114, 16 [#allocation7]
        %343 = vst [vmem:[%s342] sm:$0xff] %v341
        %s344 = sand.u32 %s50, 1
        %s345 = scalar_lea.sflag [#allocation6], %s344
        %s346 = sand.u32 %s50, 1
        %s347 = smul.addr %s346, 24
        %s348 = scalar_lea.vmem [#allocation7], %s347
        // Predicated region
        $region29: #{tpu_custom_call.1} parent=23 // pred_check
          %p349 = pneg %p60
        $region30: #{tpu_custom_call.1} parent=23 // pred_check_branch
          %351 = sbr.rel (%p349) target = $region32
        $region31: #{tpu_custom_call.1} parent=23 // pred_region
          %s352 = smul.u32 3, %s21
          %s354 = ssub.s32 384, 384
          %355 = vsyncadd %s345, %s354
          %s356 = smul.addr %s352, 128
          %s357 = scalar_lea.hbm %s2, %s356
          %s358 = sshll.u32 %s348, 4
          %s359 = int_to_ptr.vmem [resolvable:$true] %s358
          %364 = dma.vmem_to_hbm [thread:$0]  %s359, 384, %s357, %s345, 128, 128, 8
        $region32: #{tpu_custom_call.1} parent=23 // pred_fallthru
          _
      $region24: #{tpu_custom_call.1} parent=5 // pred_fallthru
        _
      %p365 = scmp.le.s32.totalorder 2, %s16
      // Predicated region
      $region33: #{tpu_custom_call.1} parent=5 // pred_check
        %p366 = pneg %p365
      $region34: #{tpu_custom_call.1} parent=5 // pred_check_branch
        %368 = sbr.rel (%p366) target = $region36
      $region35: #{tpu_custom_call.1} parent=5 // pred_region
        %s369 = ssub.s32 %s16, 2
        // Predicated region
        $region37: #{tpu_custom_call.1} parent=35 // pred_check
          %p370 = pneg %p66
        $region38: #{tpu_custom_call.1} parent=35 // pred_check_branch
          %372 = sbr.rel (%p370) target = $region40
        $region39: #{tpu_custom_call.1} parent=35 // pred_region
          %s373 = sand.u32 %s51, 1
          %s374 = scalar_lea.sflag [#allocation6], %s373
          %s375 = sand.u32 %s51, 1
          %s376 = smul.addr %s375, 24
          %s377 = scalar_lea.vmem [#allocation7], %s376
          %378 = dma.done %s374, 384
        $region40: #{tpu_custom_call.1} parent=35 // pred_fallthru
          _
      $region36: #{tpu_custom_call.1} parent=5 // pred_fallthru
        _
    $region6: #{tpu_custom_call.1} parent=1 // loop_footer
      %s20 = sadd.s32 1, %s16
    $region7: #{tpu_custom_call.1} parent=1 // loop_footer_branch
      %15 = sbr.rel target = $region3
    $region8: #{tpu_custom_call.1} parent=1 // loop_exit
      _
    %379 = vsyncpa [#allocation5], 1
    %s380 = scalar_lea.sflag [#allocation5], 1
    %381 = vsyncpa %s380, 1
    %382 = vsyncpa [#allocation6], 1
    %s383 = scalar_lea.sflag [#allocation6], 1
    %384 = vsyncpa %s383, 1

</llo_original>
